<compile_context>
chip_gen: v5e
topology: v5e:2x2
jax: 0.10.0
libtpu: 0.0.40
codegen_flags: <defaults>
</compile_context>

<pallas_src>
import jax
import jax.numpy as jnp
from jax import lax
from jax.experimental import pallas as pl
from jax.experimental.pallas import tpu as pltpu


# --------------------------------------------------------------------------
# Kernels
# --------------------------------------------------------------------------
def _pool_from_logits(x, logits, out_ref):
    """logits: (1, S) f32 lane-dense; x: (S, E). Writes (1, E) to out_ref."""
    m = jnp.max(logits, axis=-1, keepdims=True)               # (1, 1)
    e = jnp.exp(logits - m)                                    # (1, S)
    denom = jnp.sum(e, axis=-1, keepdims=True)                 # (1, 1)
    # Unnormalized weighted sum on the MXU, then a single (1, E) scale.
    pooled = jnp.dot(e.astype(x.dtype), x,
                     preferred_element_type=jnp.float32)       # (1, E)
    out_ref[...] = (pooled * pl.reciprocal(denom, approx=True)).astype(out_ref.dtype)


def _logits_lane_dense(x, wfc_ref, bfc_ref, watt_ref):
    # scores = tanh(x @ W_fc^T + b_fc)   -> (S, H), f32
    h = jnp.tanh(
        jnp.dot(x, wfc_ref[...], preferred_element_type=jnp.float32)
        + bfc_ref[...]                                         # (1, H) broadcast
    )
    # logits as (1, S): contract H of w_att (1, H) with H of h (S, H).
    # (b_att is omitted: adding a constant to every logit cancels in softmax.)
    return lax.dot_general(watt_ref[...], h,
                           dimension_numbers=(((1,), (1,)), ((), ())),
                           preferred_element_type=jnp.float32)  # (1, S)


def _attn_pool_kernel(x_ref, wfc_ref, bfc_ref, watt_ref, out_ref):
    x = x_ref[...]                                             # (S, E)
    logits = _logits_lane_dense(x, wfc_ref, bfc_ref, watt_ref)
    _pool_from_logits(x, logits, out_ref)


def _attn_pool_kernel_masked(x_ref, wfc_ref, bfc_ref, watt_ref, mask_ref, out_ref):
    x = x_ref[...]                                             # (S, E)
    logits = _logits_lane_dense(x, wfc_ref, bfc_ref, watt_ref)
    # masked_fill(mask == 0, -inf); mask_ref is (1, S), lane-dense like logits.
    logits = jnp.where(mask_ref[...] == 0, -jnp.inf, logits)
    _pool_from_logits(x, logits, out_ref)


# --------------------------------------------------------------------------
# Wrappers
# --------------------------------------------------------------------------
def prepare_params(w_fc, b_fc, w_att, b_att=None):
    """One-time parameter prep (do NOT call per forward pass).

    w_fc: (H, E), b_fc: (H,), w_att: (1, H). b_att is dropped: a constant
    added to all logits cancels in the softmax, so it is dead math.
    """
    del b_att
    H = w_fc.shape[0]
    return (
        jnp.asarray(w_fc).T,                 # (E, H)
        jnp.asarray(b_fc).reshape(1, H),     # (1, H)
        jnp.asarray(w_att).reshape(1, H),    # (1, H)
    )


def attention_pooling_batched(x, params, mask=None):
    """x: (B, S, E); mask: optional (B, S). Returns pooled embeddings (B, E)."""
    wfc_t, bfc, watt = params
    B, S, E = x.shape
    H = wfc_t.shape[1]

    x_spec = pl.BlockSpec((None, S, E), lambda b: (b, 0, 0))
    # Constant index_map -> weight blocks stay resident in VMEM across the grid.
    wfc_spec = pl.BlockSpec((E, H), lambda b: (0, 0))
    bfc_spec = pl.BlockSpec((1, H), lambda b: (0, 0))
    watt_spec = pl.BlockSpec((1, H), lambda b: (0, 0))
    out_spec = pl.BlockSpec((None, 1, E), lambda b: (b, 0, 0))

    out_shape = jax.ShapeDtypeStruct((B, 1, E), x.dtype)
    cparams = pltpu.CompilerParams(dimension_semantics=("parallel",))

    if mask is None:
        # Trace-time branch: no mask DMA, no vselect, no -inf path.
        out = pl.pallas_call(
            _attn_pool_kernel,
            out_shape=out_shape,
            grid=(B,),
            in_specs=[x_spec, wfc_spec, bfc_spec, watt_spec],
            out_specs=out_spec,
            compiler_params=cparams,
        )(x, wfc_t, bfc, watt)
    else:
        mask3 = jnp.asarray(mask).reshape(B, 1, S).astype(jnp.float32)
        mask_spec = pl.BlockSpec((None, 1, S), lambda b: (b, 0, 0))
        out = pl.pallas_call(
            _attn_pool_kernel_masked,
            out_shape=out_shape,
            grid=(B,),
            in_specs=[x_spec, wfc_spec, bfc_spec, watt_spec, mask_spec],
            out_specs=out_spec,
            compiler_params=cparams,
        )(x, wfc_t, bfc, watt, mask3)

    return out[:, 0, :]                                        # (B, E)


def attention_pooling(token_embeddings, params, mask=None):
    """Single-sequence forward matching the PyTorch module: (S, E) -> (E,)."""
    x = token_embeddings[None]                                  # (1, S, E)
    m = None if mask is None else jnp.asarray(mask)[None]       # (1, S)
    return attention_pooling_batched(x, params, m)[0]


# --------------------------------------------------------------------------
# Reference + self-test
# --------------------------------------------------------------------------
def _reference_batched(x, w_fc, b_fc, w_att, b_att, mask=None):
    scores = jnp.tanh(jnp.einsum('bse,he->bsh', x, w_fc) + b_fc)
    logits = jnp.einsum('bsh,oh->bso', scores, w_att)[..., 0] + b_att[0]
    if mask is not None:
        logits = jnp.where(mask == 0, -jnp.inf, logits)
    w = jax.nn.softmax(logits, axis=-1)
    return jnp.sum(x * w[..., None], axis=1)


if __name__ == "__main__":
    # Small shapes consistent with the module: batch=4, seq=8, embedding=32, hidden=16.
    B, S, E, H = 4, 8, 32, 16
    key = jax.random.PRNGKey(0)
    kx, kw1, kb1, kw2, kb2, km = jax.random.split(key, 6)

    x = jax.random.normal(kx, (B, S, E), dtype=jnp.float32)
    w_fc = jax.random.normal(kw1, (H, E), dtype=jnp.float32) * 0.1
    b_fc = jax.random.normal(kb1, (H,), dtype=jnp.float32) * 0.1
    w_att = jax.random.normal(kw2, (1, H), dtype=jnp.float32) * 0.1
    b_att = jax.random.normal(kb2, (1,), dtype=jnp.float32) * 0.1

    params = prepare_params(w_fc, b_fc, w_att, b_att)

    # Batched, unmasked.
    out = jax.block_until_ready(attention_pooling_batched(x, params))
    ref = _reference_batched(x, w_fc, b_fc, w_att, b_att)
    assert out.shape == (B, E)
    assert jnp.allclose(out, ref, atol=5e-3, rtol=5e-3), (out, ref)

    # Batched, masked (keep >=1 valid token per row; all-masked -> NaN, matching
    # PyTorch masked_fill + softmax semantics, so not comparable numerically).
    mask = (jax.random.uniform(km, (B, S)) > 0.3).astype(jnp.float32)
    mask = mask.at[:, 0].set(1.0)
    out_m = jax.block_until_ready(attention_pooling_batched(x, params, mask))
    ref_m = _reference_batched(x, w_fc, b_fc, w_att, b_att, mask)
    assert jnp.allclose(out_m, ref_m, atol=5e-3, rtol=5e-3), (out_m, ref_m)

    # Single-sequence path (the exact module forward signature).
    out_1 = jax.block_until_ready(attention_pooling(x[0], params))
    assert out_1.shape == (E,)
    assert jnp.allclose(out_1, ref[0], atol=5e-3, rtol=5e-3), (out_1, ref[0])

    print("KERNEL_OK")
</pallas_src>

<mosaic_0001>
module attributes {stable_mosaic.version = 11 : i64} {
  func.func @_attn_pool_kernel(%arg0: i32, %arg1: memref<1x8x32xf32, #tpu.memory_space<vmem>>, %arg2: memref<32x16xf32, #tpu.memory_space<vmem>>, %arg3: memref<1x16xf32, #tpu.memory_space<vmem>>, %arg4: memref<1x16xf32, #tpu.memory_space<vmem>>, %arg5: memref<1x1x32xf32, #tpu.memory_space<vmem>>) attributes {dimension_semantics = [#tpu.dimension_semantics<parallel>], iteration_bounds = array<i64: 4>, scalar_prefetch = 0 : i64, scratch_operands = 0 : i64, tpu.core_type = #tpu.core_type<tc>, window_params = [{transform_indices = @transform_0, window_bounds = array<i64: 1, 8, 32>}, {pipeline_mode = #tpu.pipeline_mode<synchronous>, transform_indices = @transform_1, window_bounds = array<i64: 32, 16>}, {pipeline_mode = #tpu.pipeline_mode<synchronous>, transform_indices = @transform_2, window_bounds = array<i64: 1, 16>}, {pipeline_mode = #tpu.pipeline_mode<synchronous>, transform_indices = @transform_3, window_bounds = array<i64: 1, 16>}, {transform_indices = @transform_4, window_bounds = array<i64: 1, 1, 32>}]} {
    %c0 = arith.constant 0 : index
    %c0_0 = arith.constant 0 : index
    %c0_1 = arith.constant 0 : index
    %0 = vector.load %arg1[%c0, %c0_0, %c0_1] : memref<1x8x32xf32, #tpu.memory_space<vmem>>, vector<1x8x32xf32>
    %1 = vector.shape_cast %0 : vector<1x8x32xf32> to vector<8x32xf32>
    %c0_2 = arith.constant 0 : index
    %c0_3 = arith.constant 0 : index
    %2 = vector.load %arg2[%c0_2, %c0_3] : memref<32x16xf32, #tpu.memory_space<vmem>>, vector<32x16xf32>
    %cst = arith.constant dense<0.000000e+00> : vector<8x16xf32>
    %3 = tpu.matmul %1, %2, %cst {dimension_numbers = #tpu.dot_dimension_numbers<[1], [0], [0], [1], [0, 0, 1, 1], [], []>} : vector<8x32xf32>, vector<32x16xf32>, vector<8x16xf32> -> vector<8x16xf32>
    %c0_4 = arith.constant 0 : index
    %c0_5 = arith.constant 0 : index
    %4 = vector.load %arg3[%c0_4, %c0_5] : memref<1x16xf32, #tpu.memory_space<vmem>>, vector<1x16xf32>
    %5 = vector.broadcast %4 : vector<1x16xf32> to vector<8x16xf32>
    %6 = arith.addf %3, %5 : vector<8x16xf32>
    %7 = math.tanh %6 : vector<8x16xf32>
    %c0_6 = arith.constant 0 : index
    %c0_7 = arith.constant 0 : index
    %8 = vector.load %arg4[%c0_6, %c0_7] : memref<1x16xf32, #tpu.memory_space<vmem>>, vector<1x16xf32>
    %cst_8 = arith.constant dense<0.000000e+00> : vector<1x8xf32>
    %9 = tpu.matmul %8, %7, %cst_8 {dimension_numbers = #tpu.dot_dimension_numbers<[1], [1], [0], [0], [0, 0, 1, 0], [], []>} : vector<1x16xf32>, vector<8x16xf32>, vector<1x8xf32> -> vector<1x8xf32>
    %cst_9 = arith.constant dense<0xFF800000> : vector<1xf32>
    %10 = vector.multi_reduction <maximumf>, %9, %cst_9 [1] : vector<1x8xf32> to vector<1xf32>
    %11 = vector.shape_cast %10 : vector<1xf32> to vector<1x1xf32>
    %12 = vector.broadcast %11 : vector<1x1xf32> to vector<1x8xf32>
    %13 = arith.subf %9, %12 : vector<1x8xf32>
    %14 = math.exp %13 : vector<1x8xf32>
    %cst_10 = arith.constant dense<0.000000e+00> : vector<1xf32>
    %15 = vector.multi_reduction <add>, %14, %cst_10 [1] : vector<1x8xf32> to vector<1xf32>
    %16 = vector.shape_cast %15 : vector<1xf32> to vector<1x1xf32>
    %cst_11 = arith.constant dense<0.000000e+00> : vector<1x32xf32>
    %17 = tpu.matmul %14, %1, %cst_11 {dimension_numbers = #tpu.dot_dimension_numbers<[1], [0], [0], [1], [0, 0, 1, 1], [], []>} : vector<1x8xf32>, vector<8x32xf32>, vector<1x32xf32> -> vector<1x32xf32>
    %18 = tpu.reciprocal %16 {approx = true} : vector<1x1xf32> -> vector<1x1xf32>
    %19 = vector.broadcast %18 : vector<1x1xf32> to vector<1x32xf32>
    %20 = arith.mulf %17, %19 : vector<1x32xf32>
    %c0_12 = arith.constant 0 : index
    %c0_13 = arith.constant 0 : index
    %c0_14 = arith.constant 0 : index
    %21 = vector.load %arg5[%c0_12, %c0_13, %c0_14] : memref<1x1x32xf32, #tpu.memory_space<vmem>>, vector<1x1x32xf32>
    %22 = vector.shape_cast %21 : vector<1x1x32xf32> to vector<1x32xf32>
    %23 = vector.shape_cast %20 : vector<1x32xf32> to vector<1x1x32xf32>
    tpu.vector_store %arg5[%c0_12, %c0_13, %c0_14], %23 {strides = array<i32>} : memref<1x1x32xf32, #tpu.memory_space<vmem>>, vector<1x1x32xf32>,
    return
  }
  func.func @transform_0(%arg0: i32) -> (i32, i32, i32) {
    %c0_i32 = arith.constant 0 : i32
    %c0_i32_0 = arith.constant 0 : i32
    %c0_i32_1 = arith.constant 0 : i32
    return %arg0, %c0_i32, %c0_i32_0 : i32, i32, i32
  }
  func.func @transform_1(%arg0: i32) -> (i32, i32) {
    %c0_i32 = arith.constant 0 : i32
    %c0_i32_0 = arith.constant 0 : i32
    %c0_i32_1 = arith.constant 0 : i32
    return %c0_i32, %c0_i32_0 : i32, i32
  }
  func.func @transform_2(%arg0: i32) -> (i32, i32) {
    %c0_i32 = arith.constant 0 : i32
    %c0_i32_0 = arith.constant 0 : i32
    %c0_i32_1 = arith.constant 0 : i32
    return %c0_i32, %c0_i32_0 : i32, i32
  }
  func.func @transform_3(%arg0: i32) -> (i32, i32) {
    %c0_i32 = arith.constant 0 : i32
    %c0_i32_0 = arith.constant 0 : i32
    %c0_i32_1 = arith.constant 0 : i32
    return %c0_i32, %c0_i32_0 : i32, i32
  }
  func.func @transform_4(%arg0: i32) -> (i32, i32, i32) {
    %c0_i32 = arith.constant 0 : i32
    %c0_i32_0 = arith.constant 0 : i32
    %c0_i32_1 = arith.constant 0 : i32
    return %arg0, %c0_i32, %c0_i32_0 : i32, i32, i32
  }
}

</mosaic_0001>

<llo_original>
// kernel: tpu_custom_call.1
$region0: #{tpu_custom_call.1}
  #allocation0 [shape = 'u32[]', space=smem, size = 0x4, offset = 0x4, fixed_abs, tag = 'smem constant byte address 0x4 - core index']
  #allocation1 [shape = 'u32[72,128]{1,0:T(1,128)}', space=vmem, size = 0x9000, scoped, tag = 'internal scratch']
  %s0 = inlined_call_operand.vmem [shape: f32[4,8,32], index: 0, kind: input, shape index: {}]
  %s1 = inlined_call_operand.vmem [shape: f32[32,16], index: 1, kind: input, shape index: {}]
  %s2 = inlined_call_operand.vmem [shape: f32[1,16], index: 2, kind: input, shape index: {}]
  %s3 = inlined_call_operand.vmem [shape: f32[1,16], index: 3, kind: input, shape index: {}]
  %s4 = inlined_call_operand.hbm [shape: f32[4,1,32], index: 4, kind: output, shape index: {}]
  %s5 = sld [smem:[#allocation0]]
  $region49: #{tpu_custom_call.1} parent=0
    _
  %s7 = ssub.s32 1, %s5
  %s8 = scalar_select 0, %s7, %s5
  $region1: #{tpu_custom_call.1} parent=0
    #allocation2 [shape = 'u8[1024]{0}', space=vmem, size = 0x400, scoped, tag = 'output window, operand 0']
    #allocation3 [shape = 's32[2]{0}', space=sflag, size = 0x8, scoped, tag = 'scoped memory for tpu_custom_call.1']
    %9 = vsyncpa [#allocation3], 0
    %s10 = scalar_lea.sflag [#allocation3], 1
    %11 = vsyncpa %s10, 0
    loop: start=0, step=1, limit=6
    $region2: #{tpu_custom_call.1} parent=1 // loop_pre_header
      _
    $region3: #{tpu_custom_call.1} parent=1 // loop_header
      %s13 = sphi 0, %s17
      %p14 = scmp.ge.s32.totalorder %s13, 6
      %s23 = sphi 0, %s25
      %s26 = sphi 0, %s23
      %s27 = sphi 0, %s26
      %s43 = sphi 0, %s27
      %s47 = sphi 0, %s47
      %s49 = sphi 0, %s47
      %s50 = sphi 0, %s49
      %s64 = sphi 0, %s50
      %s68 = sphi 0, %s68
      %s70 = sphi 0, %s68
      %s71 = sphi 0, %s70
      %s85 = sphi 0, %s71
      %s89 = sphi 0, %s89
      %s91 = sphi 0, %s89
      %s92 = sphi 0, %s91
      %s106 = sphi 0, %s92
      %s112 = sphi 0, %s114
      %s115 = sphi 0, %s112
      %s116 = sphi 0, %s115
      %s132 = sphi 0, %s116
    $region4: #{tpu_custom_call.1} parent=1 // loop_header_branch
      %16 = sbr.rel (%p14) target = $region8
    $region5: #{tpu_custom_call.1} parent=1 // loop_body
      %s18 = ssub.s32 %s13, 1
      %s19 = ssub.s32 %s13, 2
      %s20 = sadd.s32 %s13, 1
      %s21 = ssub.s32 %s13, %s20
      %p22 = scmp.eq.s32.totalorder %s21, 0
      %s24 = sadd.s32 %s23, 1
      %s25 = scalar_select %p22, %s23, %s24
      %p28 = pneg %p22
      %p29 = scmp.eq.s32.totalorder %s13, 3
      %p30 = por %p28, %p29
      %p31 = scmp.ne.s32.totalorder %s23, %s26
      %p32 = scmp.eq.s32.totalorder %s13, 0
      %p33 = por %p31, %p32
      %p34 = scmp.ne.s32.totalorder %s23, %s26
      %p35 = scmp.eq.s32.totalorder %s18, 3
      %p36 = por %p34, %p35
      %p37 = scmp.ne.s32.totalorder %s26, %s27
      %p38 = scmp.eq.s32.totalorder %s18, 0
      %p39 = por %p37, %p38
      %p40 = scmp.ne.s32.totalorder %s26, %s27
      %p41 = scmp.eq.s32.totalorder %s19, 3
      %p42 = por %p40, %p41
      %p44 = scmp.ne.s32.totalorder %s27, %s43
      %p45 = scmp.eq.s32.totalorder %s19, 0
      %p46 = por %p44, %p45
      %s48 = sadd.s32 %s47, 1
      %p51 = scmp.eq.s32.totalorder %s13, 3
      %p52 = scmp.ne.s32.totalorder %s47, %s49
      %p53 = scmp.eq.s32.totalorder %s13, 0
      %p54 = por %p52, %p53
      %p55 = scmp.ne.s32.totalorder %s47, %s49
      %p56 = scmp.eq.s32.totalorder %s18, 3
      %p57 = por %p55, %p56
      %p58 = scmp.ne.s32.totalorder %s49, %s50
      %p59 = scmp.eq.s32.totalorder %s18, 0
      %p60 = por %p58, %p59
      %p61 = scmp.ne.s32.totalorder %s49, %s50
      %p62 = scmp.eq.s32.totalorder %s19, 3
      %p63 = por %p61, %p62
      %p65 = scmp.ne.s32.totalorder %s50, %s64
      %p66 = scmp.eq.s32.totalorder %s19, 0
      %p67 = por %p65, %p66
      %s69 = sadd.s32 %s68, 1
      %p72 = scmp.eq.s32.totalorder %s13, 3
      %p73 = scmp.ne.s32.totalorder %s68, %s70
      %p74 = scmp.eq.s32.totalorder %s13, 0
      %p75 = por %p73, %p74
      %p76 = scmp.ne.s32.totalorder %s68, %s70
      %p77 = scmp.eq.s32.totalorder %s18, 3
      %p78 = por %p76, %p77
      %p79 = scmp.ne.s32.totalorder %s70, %s71
      %p80 = scmp.eq.s32.totalorder %s18, 0
      %p81 = por %p79, %p80
      %p82 = scmp.ne.s32.totalorder %s70, %s71
      %p83 = scmp.eq.s32.totalorder %s19, 3
      %p84 = por %p82, %p83
      %p86 = scmp.ne.s32.totalorder %s71, %s85
      %p87 = scmp.eq.s32.totalorder %s19, 0
      %p88 = por %p86, %p87
      %s90 = sadd.s32 %s89, 1
      %p93 = scmp.eq.s32.totalorder %s13, 3
      %p94 = scmp.ne.s32.totalorder %s89, %s91
      %p95 = scmp.eq.s32.totalorder %s13, 0
      %p96 = por %p94, %p95
      %p97 = scmp.ne.s32.totalorder %s89, %s91
      %p98 = scmp.eq.s32.totalorder %s18, 3
      %p99 = por %p97, %p98
      %p100 = scmp.ne.s32.totalorder %s91, %s92
      %p101 = scmp.eq.s32.totalorder %s18, 0
      %p102 = por %p100, %p101
      %p103 = scmp.ne.s32.totalorder %s91, %s92
      %p104 = scmp.eq.s32.totalorder %s19, 3
      %p105 = por %p103, %p104
      %p107 = scmp.ne.s32.totalorder %s92, %s106
      %p108 = scmp.eq.s32.totalorder %s19, 0
      %p109 = por %p107, %p108
      %s110 = ssub.s32 %s13, %s20
      %p111 = scmp.eq.s32.totalorder %s110, 0
      %s113 = sadd.s32 %s112, 1
      %s114 = scalar_select %p111, %s112, %s113
      %p117 = pneg %p111
      %p118 = scmp.eq.s32.totalorder %s13, 3
      %p119 = por %p117, %p118
      %p120 = scmp.ne.s32.totalorder %s112, %s115
      %p121 = scmp.eq.s32.totalorder %s13, 0
      %p122 = por %p120, %p121
      %p123 = scmp.ne.s32.totalorder %s112, %s115
      %p124 = scmp.eq.s32.totalorder %s18, 3
      %p125 = por %p123, %p124
      %p126 = scmp.ne.s32.totalorder %s115, %s116
      %p127 = scmp.eq.s32.totalorder %s18, 0
      %p128 = por %p126, %p127
      %p129 = scmp.ne.s32.totalorder %s115, %s116
      %p130 = scmp.eq.s32.totalorder %s19, 3
      %p131 = por %p129, %p130
      %p133 = scmp.ne.s32.totalorder %s116, %s132
      %p134 = scmp.eq.s32.totalorder %s19, 0
      %p135 = por %p133, %p134
      %p136 = scmp.le.s32.totalorder 1, %s13
      %p137 = scmp.lt.s32.totalorder %s13, 5
      %p138 = pnand %p136, %p137
      %p139 = pneg %p138
      // Predicated region
      $region9: #{tpu_custom_call.1} parent=5 // pred_check
        _
      $region10: #{tpu_custom_call.1} parent=5 // pred_check_branch
        %141 = sbr.rel (%p138) target = $region12
      $region11: #{tpu_custom_call.1} parent=5 // pred_region
        %s142 = ssub.s32 %s13, 1
        // Predicated region
        $region13: #{tpu_custom_call.1} parent=11 // pred_check
          %p143 = pneg %p60
        $region14: #{tpu_custom_call.1} parent=11 // pred_check_branch
          %145 = sbr.rel (%p143) target = $region16
        $region15: #{tpu_custom_call.1} parent=11 // pred_region
          _
        $region16: #{tpu_custom_call.1} parent=11 // pred_fallthru
          _
        // Predicated region
        $region17: #{tpu_custom_call.1} parent=11 // pred_check
          %p146 = pneg %p81
        $region18: #{tpu_custom_call.1} parent=11 // pred_check_branch
          %148 = sbr.rel (%p146) target = $region20
        $region19: #{tpu_custom_call.1} parent=11 // pred_region
          _
        $region20: #{tpu_custom_call.1} parent=11 // pred_fallthru
          _
        // Predicated region
        $region21: #{tpu_custom_call.1} parent=11 // pred_check
          %p149 = pneg %p102
        $region22: #{tpu_custom_call.1} parent=11 // pred_check_branch
          %151 = sbr.rel (%p149) target = $region24
        $region23: #{tpu_custom_call.1} parent=11 // pred_region
          _
        $region24: #{tpu_custom_call.1} parent=11 // pred_fallthru
          _
      $region12: #{tpu_custom_call.1} parent=5 // pred_fallthru
        _
      %p152 = scmp.lt.s32.totalorder %s13, 4
      // Predicated region
      $region25: #{tpu_custom_call.1} parent=5 // pred_check
        %p153 = pneg %p152
      $region26: #{tpu_custom_call.1} parent=5 // pred_check_branch
        %155 = sbr.rel (%p153) target = $region28
      $region27: #{tpu_custom_call.1} parent=5 // pred_region
        // Predicated region
        $region29: #{tpu_custom_call.1} parent=27 // pred_check
          %p156 = pneg %p33
        $region30: #{tpu_custom_call.1} parent=27 // pred_check_branch
          %158 = sbr.rel (%p156) target = $region32
        $region31: #{tpu_custom_call.1} parent=27 // pred_region
          %p159 = scmp.lt.s32.totalorder %s13, 3
          %s160 = scalar_select %p159, %s13, 3
          %s161 = smul.addr %s160, 8
          %s162 = scalar_lea.vmem %s0, %s161
        $region32: #{tpu_custom_call.1} parent=27 // pred_fallthru
          _
      $region28: #{tpu_custom_call.1} parent=5 // pred_fallthru
        _
      %p163 = scmp.le.s32.totalorder 1, %s13
      %p164 = scmp.lt.s32.totalorder %s13, 5
      %p165 = pnand %p163, %p164
      %p166 = pneg %p165
      // Predicated region
      $region33: #{tpu_custom_call.1} parent=5 // pred_check
        _
      $region34: #{tpu_custom_call.1} parent=5 // pred_check_branch
        %168 = sbr.rel (%p165) target = $region36
      $region35: #{tpu_custom_call.1} parent=5 // pred_region
        %s169 = ssub.s32 %s13, 1
        %p170 = scmp.lt.s32.totalorder %s18, 3
        %s171 = scalar_select %p170, %s18, 3
        %s172 = smul.addr %s171, 8
        %s173 = scalar_lea.vmem %s0, %s172
        %p174 = pneg %p39
        %p175 = pneg %p36
        %p176 = pneg %p60
        %p177 = pneg %p57
        %p178 = pneg %p81
        %p179 = pneg %p78
        %p180 = pneg %p102
        %p181 = pneg %p99
        %p182 = pneg %p128
        %p183 = pneg %p125
        %s184 = sand.u32 %s115, 1
        %s185 = scalar_lea.sflag [#allocation3], %s184
        %s186 = sand.u32 %s115, 1
        %s187 = scalar_lea.vmem [#allocation2], %s186
        %p188 = scmp.lt.s32.totalorder %s18, 3
        %s189 = scalar_select %p188, %s18, 3
        %s190 = smul.addr %s189, 8
        %s191 = scalar_lea.vmem %s0, %s190
        %v192 = vld [vmem:[%s191] sm:$0xff]
        %v193 = vld [vmem:[%s1] sm:$0xff]
        %v194 = vld [vmem:[%s1 + $0x8] sm:$0xff]
        %v195 = vld [vmem:[%s1 + $0x10] sm:$0xff]
        %v196 = vld [vmem:[%s1 + $0x18] sm:$0xff]
        %v197 = vld [vmem:[%s2] sm:$0x1]
        %v199 = vperm.slane %v197, 0
        %vm201 = vcmask 261120
        %v203 = vsel %vm201, %v192, 0
        %205 = vmatpush.msra.mxu0 0.0
        %206 = vmatpush.msra.mxu0 0.0
        %207 = vmatpush.msra.mxu0 0.0
        %208 = vmatpush.msra.mxu0 0.0
        %209 = vmatpush.msra.mxu0 0.0
        %210 = vmatpush.msra.mxu0 0.0
        %211 = vmatpush.msra.mxu0 0.0
        %212 = vmatpush.msra.mxu0 0.0
        %213 = vmatpush.msra.mxu0 0.0
        %214 = vmatpush.msra.mxu0 0.0
        %215 = vmatpush.msra.mxu0 0.0
        %216 = vmatpush.msra.mxu0 0.0
        %217 = vmatpush.msra.mxu0 %v196
        %218 = vmatpush.msra.mxu0 %v195
        %219 = vmatpush.msra.mxu0 %v194
        %220 = vmatpush.msra.mxu0 %v193
        %221 = vmatmul.f32.gmra.mxu0 %v203
        %v222 = vpop.f32.mrf.mxu0
        %v223 = vadd.f32 %v199, %v222
        %224 = vdwg.mxu0
        %v225 = vtanh.pop %v223
        %v226 = vld [vmem:[%s3] sm:$0x1]
        %vm227 = vcmask 130048
        %v229 = vsel %vm227, %v226, 0
        %v232 = vsel %vm227, %v225, 0
        %234 = vmatpush.xpose.msra.mxu0 0.0
        %235 = vmatpush.xpose.msra.mxu0 0.0
        %236 = vmatpush.xpose.msra.mxu0 0.0
        %237 = vmatpush.xpose.msra.mxu0 0.0
        %238 = vmatpush.xpose.msra.mxu0 0.0
        %239 = vmatpush.xpose.msra.mxu0 0.0
        %240 = vmatpush.xpose.msra.mxu0 0.0
        %241 = vmatpush.xpose.msra.mxu0 0.0
        %242 = vmatpush.xpose.msra.mxu0 0.0
        %243 = vmatpush.xpose.msra.mxu0 0.0
        %244 = vmatpush.xpose.msra.mxu0 0.0
        %245 = vmatpush.xpose.msra.mxu0 0.0
        %246 = vmatpush.xpose.msra.mxu0 0.0
        %247 = vmatpush.xpose.msra.mxu0 0.0
        %248 = vmatpush.xpose.msra.mxu0 0.0
        %249 = vmatpush.xpose.msra.mxu0 %v232
        %250 = vmatmul.f32.gmra.mxu0 %v229
        %v251 = vpop.f32.mrf.mxu0
        %v252 = vadd.f32 0.0, %v251
        %253 = vdwg.mxu0
        %vm254 = vcmask 57344
        %v255 = vsel %vm254, %v252, -inf
        %256 = vmax.xlane.f32.xlu0 %v255
        %v257 = vpop.xlane.xlu0 %256
        %v258 = vsub.f32 %v252, %v257
        %v259 = vmul.f32 %v258, 1.442695
        %v260 = vpow.pop %v259
        %v261 = vsel %vm254, %v260, 0.0
        %262 = vadd.xlane.f32.xlu0 %v261
        %v263 = vpop.xlane.xlu0 %262
        %vm264 = vcmask 64512
        %v266 = vsel %vm264, %v260, 0
        %268 = vmatpush.msra.mxu0 0.0
        %269 = vmatpush.msra.mxu0 0.0
        %270 = vmatpush.msra.mxu0 0.0
        %271 = vmatpush.msra.mxu0 0.0
        %272 = vmatpush.msra.mxu0 0.0
        %273 = vmatpush.msra.mxu0 0.0
        %274 = vmatpush.msra.mxu0 0.0
        %275 = vmatpush.msra.mxu0 0.0
        %276 = vmatpush.msra.mxu0 0.0
        %277 = vmatpush.msra.mxu0 0.0
        %278 = vmatpush.msra.mxu0 0.0
        %279 = vmatpush.msra.mxu0 0.0
        %280 = vmatpush.msra.mxu0 0.0
        %281 = vmatpush.msra.mxu0 0.0
        %282 = vmatpush.msra.mxu0 0.0
        %283 = vmatpush.msra.mxu0 %v192
        %284 = vmatmul.f32.gmra.mxu0 %v266
        %v285 = vpop.f32.mrf.mxu0
        %v286 = vadd.f32 0.0, %v285
        %287 = vdwg.mxu0
        %v288 = vrcp.pop %v263
        %v289 = vmul.f32 %v286, %v288
        %vm290 = vcmask 253952
        %291 = vst.msk [vmem:[%s187] sm:$0x1] %vm290, %v289
        %s292 = sand.u32 %s115, 1
        %s293 = scalar_lea.sflag [#allocation3], %s292
        %s294 = sand.u32 %s115, 1
        %s295 = scalar_lea.vmem [#allocation2], %s294
        // Predicated region
        $region37: #{tpu_custom_call.1} parent=35 // pred_check
          %p296 = pneg %p125
        $region38: #{tpu_custom_call.1} parent=35 // pred_check_branch
          %298 = sbr.rel (%p296) target = $region40
        $region39: #{tpu_custom_call.1} parent=35 // pred_region
          %300 = vsyncadd %s293, 0
          %s301 = scalar_lea.hbm %s4, %s18
          %s303 = sshll.u32 %s295, 4
          %s304 = int_to_ptr.vmem [resolvable:$true] %s303
          %s305 = sshll.u32 %s301, 4
          %s306 = int_to_ptr.hbm [resolvable:$true] %s305
          %308 = dma.vmem_to_hbm [thread:$0]  %s304, 16, %s306, %s293
        $region40: #{tpu_custom_call.1} parent=35 // pred_fallthru
          _
      $region36: #{tpu_custom_call.1} parent=5 // pred_fallthru
        _
      %p309 = scmp.le.s32.totalorder 2, %s13
      // Predicated region
      $region41: #{tpu_custom_call.1} parent=5 // pred_check
        %p310 = pneg %p309
      $region42: #{tpu_custom_call.1} parent=5 // pred_check_branch
        %312 = sbr.rel (%p310) target = $region44
      $region43: #{tpu_custom_call.1} parent=5 // pred_region
        %s313 = ssub.s32 %s13, 2
        // Predicated region
        $region45: #{tpu_custom_call.1} parent=43 // pred_check
          %p314 = pneg %p131
        $region46: #{tpu_custom_call.1} parent=43 // pred_check_branch
          %316 = sbr.rel (%p314) target = $region48
        $region47: #{tpu_custom_call.1} parent=43 // pred_region
          %s317 = sand.u32 %s116, 1
          %s318 = scalar_lea.sflag [#allocation3], %s317
          %s319 = sand.u32 %s116, 1
          %s320 = scalar_lea.vmem [#allocation2], %s319
          %322 = dma.done %s318, 16
        $region48: #{tpu_custom_call.1} parent=43 // pred_fallthru
          _
      $region44: #{tpu_custom_call.1} parent=5 // pred_fallthru
        _
    $region6: #{tpu_custom_call.1} parent=1 // loop_footer
      %s17 = sadd.s32 1, %s13
    $region7: #{tpu_custom_call.1} parent=1 // loop_footer_branch
      %12 = sbr.rel target = $region3
    $region8: #{tpu_custom_call.1} parent=1 // loop_exit
      _
    %323 = vsyncpa [#allocation3], 1
    %s324 = scalar_lea.sflag [#allocation3], 1
    %325 = vsyncpa %s324, 1

</llo_original>
